<compile_context>
chip_gen: v5e
topology: v5e:2x2
jax: 0.10.0
libtpu: 0.0.40
codegen_flags: <defaults>
</compile_context>

<pallas_src>
import jax
import jax.numpy as jnp
from jax.experimental import pallas as pl
from jax.experimental.pallas import tpu as pltpu


# ----------------------------------------------------------------------------
# helpers
# ----------------------------------------------------------------------------
def _round_up(n, m):
    return ((n + m - 1) // m) * m


def _pick_tile(n, target):
    """Largest multiple of 128 that divides n and is <= target (n % 128 == 0)."""
    t = min(target, n)
    t -= t % 128
    t = max(t, 128)
    while n % t != 0:
        t -= 128
    return t


# ----------------------------------------------------------------------------
# Kernel 1: fused prep — single pass over adj:
#   adj_bf16[i, k] = bf16(adj[i, k])
#   norm[i]        = rsqrt(1 + sum_k adj[i, k])   (accumulated in the output)
# ----------------------------------------------------------------------------
def _prep_kernel(adj_ref, adjb_ref, norm_ref):
    k = pl.program_id(1)
    a = adj_ref[...].astype(jnp.float32)
    adjb_ref[...] = a.astype(jnp.bfloat16)

    @pl.when(k == 0)
    def _():
        norm_ref[...] = jnp.zeros_like(norm_ref)

    # norm output block (index map (i,0)) is resident across k -> accumulate
    # the row degree directly into it; no scratch needed.
    norm_ref[...] += jnp.sum(a, axis=-1, keepdims=True)

    @pl.when(k == pl.num_programs(1) - 1)
    def _():
        norm_ref[...] = jax.lax.rsqrt(1.0 + norm_ref[...])


def _prep(adj_p, *, tm=256, tk=2048):
    Np = adj_p.shape[0]
    tm = _pick_tile(Np, tm)
    tk = _pick_tile(Np, tk)
    return pl.pallas_call(
        _prep_kernel,
        out_shape=(jax.ShapeDtypeStruct((Np, Np), jnp.bfloat16),
                   jax.ShapeDtypeStruct((Np, 1), jnp.float32)),
        grid_spec=pltpu.PrefetchScalarGridSpec(
            num_scalar_prefetch=0,
            grid=(Np // tm, Np // tk),
            in_specs=[pl.BlockSpec((tm, tk), lambda i, k: (i, k))],
            out_specs=(pl.BlockSpec((tm, tk), lambda i, k: (i, k)),
                       pl.BlockSpec((tm, 1), lambda i, k: (i, 0))),
        ),
        compiler_params=pltpu.CompilerParams(
            dimension_semantics=("parallel", "arbitrary")),
    )(adj_p)


# ----------------------------------------------------------------------------
# Kernel 2: pre-scale features once:  xs = norm * x
# ----------------------------------------------------------------------------
def _scale_kernel(x_ref, norm_ref, o_ref):
    o_ref[...] = (norm_ref[...] * x_ref[...].astype(jnp.float32)).astype(o_ref.dtype)


def _scale(x_p, norm_p, out_dtype, *, tm=1024):
    Np, Fp = x_p.shape
    tm = _pick_tile(Np, tm)
    return pl.pallas_call(
        _scale_kernel,
        out_shape=jax.ShapeDtypeStruct((Np, Fp), out_dtype),
        grid_spec=pltpu.PrefetchScalarGridSpec(
            num_scalar_prefetch=0,
            grid=(Np // tm,),
            in_specs=[pl.BlockSpec((tm, Fp), lambda i: (i, 0)),
                      pl.BlockSpec((tm, 1), lambda i: (i, 0))],
            out_specs=pl.BlockSpec((tm, Fp), lambda i: (i, 0)),
        ),
        compiler_params=pltpu.CompilerParams(
            dimension_semantics=("parallel",)),
    )(x_p, norm_p)


# ----------------------------------------------------------------------------
# Kernel 3: GCN aggregation
#   acc[i,:] = xs[i,:] + sum_k adj[i,k] * xs[k,:]      (k-tiled matmul)
#   out[i,:] = norm[i] * acc[i,:]
# Two variants: xs whole-resident in VMEM vs. streamed per-k block;
# f32 accumulates directly into the resident output block, other dtypes use an
# f32 scratch accumulator.
# ----------------------------------------------------------------------------
def _make_gcn_kernel(resident_xs, use_scratch):
    def kernel(*refs):
        if use_scratch:
            *in_refs, o_ref, acc_ref = refs
        else:
            *in_refs, o_ref = refs
            acc_ref = o_ref
        if resident_xs:
            adj_ref, xs_ref, norm_ref = in_refs
        else:
            adj_ref, xsk_ref, xsi_ref, norm_ref = in_refs

        i = pl.program_id(0)
        k = pl.program_id(1)
        tm, tk = adj_ref.shape

        @pl.when(k == 0)
        def _():
            # Initialize the accumulator with the self term xs_i (epilogue is
            # then just one multiply by norm_i).
            if resident_xs:
                xs_i = xs_ref[pl.ds(pl.multiple_of(i * tm, tm), tm), :]
            else:
                xs_i = xsi_ref[...]
            acc_ref[...] = xs_i.astype(jnp.float32)

        if resident_xs:
            xs_k = xs_ref[pl.ds(pl.multiple_of(k * tk, tk), tk), :]
        else:
            xs_k = xsk_ref[...]
        acc_ref[...] += jnp.dot(adj_ref[...], xs_k,
                                preferred_element_type=jnp.float32)

        @pl.when(k == pl.num_programs(1) - 1)
        def _():
            ni = norm_ref[...]
            if use_scratch:
                o_ref[...] = (ni * acc_ref[...]).astype(o_ref.dtype)
            else:
                o_ref[...] = ni * acc_ref[...]

    return kernel


def pure_conv_gcn(x, adj, *, tm=512, tk=1024, norm=None, resident_xs=None):
    """PureConv(indim, indim, aggr='gcn').forward(x, adj) with dense adj.

    x: (N, F) node features; adj: (N, N) dense 0/1 adjacency.
    `norm` (and a pre-cast bf16 `adj`) may be supplied to skip the prep pass
    when stacking layers. `resident_xs` overrides the auto choice of keeping
    the pre-scaled features whole-resident in VMEM.
    """
    N, F = x.shape
    assert adj.shape == (N, N)

    Np = _round_up(N, 512)     # coarse pad so the tile picker can reach targets
    Fp = _round_up(F, 128)

    adj_p = adj if Np == N else jnp.pad(adj, ((0, Np - N), (0, Np - N)))
    x_p = x if (Np == N and Fp == F) else jnp.pad(x, ((0, Np - N), (0, Fp - F)))

    # --- fused prep: adj -> bf16 + norm in a single pass over adj -----------
    if norm is None or adj_p.dtype != jnp.bfloat16:
        adj_b, norm_comp = _prep(adj_p)
    else:
        adj_b, norm_comp = adj_p, None
    if norm is None:
        norm_p = norm_comp
    else:
        norm_p = jnp.asarray(norm, jnp.float32).reshape(-1, 1)
        if Np != N:
            norm_p = jnp.pad(norm_p, ((0, Np - N), (0, 0)), constant_values=1.0)

    # --- pre-scale x once: xs = norm * x -------------------------------------
    xs_dtype = jnp.float32 if x.dtype == jnp.float32 else x.dtype
    xs = _scale(x_p, norm_p, xs_dtype)

    # --- aggregation tiling ---------------------------------------------------
    tm = _pick_tile(Np, tm)
    if Np // tm < 2 and tm > 128:   # keep >= 2 row blocks so v7x megacore is fed
        tm = _pick_tile(Np, max(tm // 2, 128))
    tk = _pick_tile(Np, tk)

    xs_itemsize = jnp.dtype(xs.dtype).itemsize
    out_itemsize = jnp.dtype(x.dtype).itemsize
    xs_bytes = Np * Fp * xs_itemsize
    if resident_xs is None:
        resident_xs = xs_bytes <= (8 << 20)   # safe across v5e/v6e/v7x budgets
    use_scratch = x.dtype != jnp.float32

    # VMEM estimate: double-buffered blocks (+ resident xs, + f32 scratch).
    est = 2 * tm * tk * 2                     # adj tile (bf16)
    est += 2 * tm * 128 * 4                   # norm (tm,1) pads lanes to 128
    est += 2 * tm * Fp * out_itemsize         # output block
    if resident_xs:
        est += xs_bytes
    else:
        est += 2 * tk * Fp * xs_itemsize + 2 * tm * Fp * xs_itemsize
    if use_scratch:
        est += tm * Fp * 4
    vmem_limit = int(min(max(2 * est, 32 << 20), 48 << 20))

    if resident_xs:
        in_specs = [
            pl.BlockSpec((tm, tk), lambda i, k: (i, k)),        # adj tile (bf16)
            pl.BlockSpec(memory_space=pltpu.MemorySpace.VMEM),  # xs whole-resident
            pl.BlockSpec((tm, 1), lambda i, k: (i, 0)),         # norm_i
        ]
        operands = (adj_b, xs, norm_p)
    else:
        in_specs = [
            pl.BlockSpec((tm, tk), lambda i, k: (i, k)),        # adj tile (bf16)
            pl.BlockSpec((tk, Fp), lambda i, k: (k, 0)),        # xs, source rows
            pl.BlockSpec((tm, Fp), lambda i, k: (i, 0)),        # xs, dest rows
            pl.BlockSpec((tm, 1), lambda i, k: (i, 0)),         # norm_i
        ]
        operands = (adj_b, xs, xs, norm_p)

    scratch = [pltpu.VMEM((tm, Fp), jnp.float32)] if use_scratch else []

    out = pl.pallas_call(
        _make_gcn_kernel(resident_xs, use_scratch),
        out_shape=jax.ShapeDtypeStruct((Np, Fp), x.dtype),
        grid_spec=pltpu.PrefetchScalarGridSpec(
            num_scalar_prefetch=0,
            grid=(Np // tm, Np // tk),
            in_specs=in_specs,
            out_specs=pl.BlockSpec((tm, Fp), lambda i, k: (i, 0)),
            scratch_shapes=scratch,
        ),
        compiler_params=pltpu.CompilerParams(
            dimension_semantics=("parallel", "arbitrary"),
            vmem_limit_bytes=vmem_limit),
    )(*operands)

    if Np != N or Fp != F:
        out = out[:N, :F]
    return out


# ----------------------------------------------------------------------------
# Pure-JAX reference (mirrors the PyTorch forward exactly)
# ----------------------------------------------------------------------------
def pure_conv_gcn_ref(x, adj):
    norm = jax.lax.rsqrt(1.0 + jnp.sum(adj, axis=-1)).reshape(-1, 1)
    x = norm * x
    x = adj @ x + x
    x = norm * x
    return x


if __name__ == "__main__":
    key = jax.random.PRNGKey(0)
    k_adj, k_x, k_adj2, k_x2 = jax.random.split(key, 4)

    # --- test 1: f32 features, aligned shapes (resident xs, in-place acc) ----
    N, F = 512, 128
    adj = jax.random.bernoulli(k_adj, p=0.05, shape=(N, N)).astype(jnp.float32)
    x = jax.random.normal(k_x, (N, F), dtype=jnp.float32)

    out = jax.block_until_ready(pure_conv_gcn(x, adj))
    ref = pure_conv_gcn_ref(x, adj)
    assert out.shape == (N, F)
    assert jnp.allclose(out, ref, atol=1e-4, rtol=1e-4), "f32 mismatch vs reference"

    # --- test 2: bf16 features + ragged shapes (padding + scratch path) ------
    N2, F2 = 300, 96
    adj2 = jax.random.bernoulli(k_adj2, p=0.05, shape=(N2, N2)).astype(jnp.float32)
    x2 = jax.random.normal(k_x2, (N2, F2), dtype=jnp.float32)

    out2 = jax.block_until_ready(pure_conv_gcn(x2.astype(jnp.bfloat16), adj2))
    ref2 = pure_conv_gcn_ref(x2, adj2)
    assert out2.shape == (N2, F2)
    assert jnp.allclose(out2.astype(jnp.float32), ref2, atol=5e-2, rtol=5e-2), \
        "bf16 mismatch vs reference"

    # --- test 3: streamed xs + pre-cast bf16 adj + precomputed norm ----------
    norm_pre = jax.lax.rsqrt(1.0 + jnp.sum(adj, axis=-1))
    out3 = jax.block_until_ready(
        pure_conv_gcn(x, adj.astype(jnp.bfloat16), norm=norm_pre,
                      resident_xs=False))
    assert jnp.allclose(out3, ref, atol=1e-4, rtol=1e-4), \
        "streaming-path mismatch vs reference"

    print("KERNEL_OK")
</pallas_src>

<mosaic_0001>
module attributes {stable_mosaic.version = 11 : i64} {
  func.func @_prep_kernel(%arg0: i32, %arg1: i32, %arg2: memref<256x512xf32, #tpu.memory_space<vmem>>, %arg3: memref<256x512xbf16, #tpu.memory_space<vmem>>, %arg4: memref<256x1xf32, #tpu.memory_space<vmem>>) attributes {dimension_semantics = [#tpu.dimension_semantics<parallel>, #tpu.dimension_semantics<arbitrary>], iteration_bounds = array<i64: 2, 1>, scalar_prefetch = 0 : i64, scratch_operands = 0 : i64, tpu.core_type = #tpu.core_type<tc>, window_params = [{transform_indices = @transform_0, window_bounds = array<i64: 256, 512>}, {transform_indices = @transform_1, window_bounds = array<i64: 256, 512>}, {transform_indices = @transform_2, window_bounds = array<i64: 256, 1>}]} {
    %c0 = arith.constant 0 : index
    %c0_0 = arith.constant 0 : index
    %0 = vector.load %arg2[%c0, %c0_0] : memref<256x512xf32, #tpu.memory_space<vmem>>, vector<256x512xf32>
    %1 = arith.truncf %0 : vector<256x512xf32> to vector<256x512xbf16>
    %c0_1 = arith.constant 0 : index
    %c0_2 = arith.constant 0 : index
    %2 = vector.load %arg3[%c0_1, %c0_2] : memref<256x512xbf16, #tpu.memory_space<vmem>>, vector<256x512xbf16>
    tpu.vector_store %arg3[%c0_1, %c0_2], %1 {strides = array<i32>} : memref<256x512xbf16, #tpu.memory_space<vmem>>, vector<256x512xbf16>,
    %c0_i32 = arith.constant 0 : i32
    %3 = arith.cmpi eq, %arg1, %c0_i32 : i32
    %4 = arith.extui %3 : i1 to i32
    %c0_i32_3 = arith.constant 0 : i32
    %5 = arith.cmpi ne, %4, %c0_i32_3 : i32
    scf.if %5 {
      %cst_10 = arith.constant 0.000000e+00 : f32
      %14 = vector.broadcast %cst_10 : f32 to vector<256x1xf32>
      %c0_11 = arith.constant 0 : index
      %c0_12 = arith.constant 0 : index
      %15 = vector.load %arg4[%c0_11, %c0_12] : memref<256x1xf32, #tpu.memory_space<vmem>>, vector<256x1xf32>
      tpu.vector_store %arg4[%c0_11, %c0_12], %14 {strides = array<i32>} : memref<256x1xf32, #tpu.memory_space<vmem>>, vector<256x1xf32>,
    } else {
    }
    %c0_4 = arith.constant 0 : index
    %c0_5 = arith.constant 0 : index
    %6 = vector.load %arg4[%c0_4, %c0_5] : memref<256x1xf32, #tpu.memory_space<vmem>>, vector<256x1xf32>
    %cst = arith.constant dense<0.000000e+00> : vector<256xf32>
    %7 = vector.multi_reduction <add>, %0, %cst [1] : vector<256x512xf32> to vector<256xf32>
    %8 = vector.shape_cast %7 : vector<256xf32> to vector<256x1xf32>
    %9 = arith.addf %6, %8 : vector<256x1xf32>
    %c0_6 = arith.constant 0 : index
    %c0_7 = arith.constant 0 : index
    %10 = vector.load %arg4[%c0_6, %c0_7] : memref<256x1xf32, #tpu.memory_space<vmem>>, vector<256x1xf32>
    tpu.vector_store %arg4[%c0_6, %c0_7], %9 {strides = array<i32>} : memref<256x1xf32, #tpu.memory_space<vmem>>, vector<256x1xf32>,
    %c0_i32_8 = arith.constant 0 : i32
    %11 = arith.cmpi eq, %arg1, %c0_i32_8 : i32
    %12 = arith.extui %11 : i1 to i32
    %c0_i32_9 = arith.constant 0 : i32
    %13 = arith.cmpi ne, %12, %c0_i32_9 : i32
    scf.if %13 {
      %c0_10 = arith.constant 0 : index
      %c0_11 = arith.constant 0 : index
      %14 = vector.load %arg4[%c0_10, %c0_11] : memref<256x1xf32, #tpu.memory_space<vmem>>, vector<256x1xf32>
      %cst_12 = arith.constant 1.000000e+00 : f32
      %15 = vector.broadcast %cst_12 : f32 to vector<256x1xf32>
      %16 = arith.addf %15, %14 : vector<256x1xf32>
      %17 = math.rsqrt %16 : vector<256x1xf32>
      %c0_13 = arith.constant 0 : index
      %c0_14 = arith.constant 0 : index
      %18 = vector.load %arg4[%c0_13, %c0_14] : memref<256x1xf32, #tpu.memory_space<vmem>>, vector<256x1xf32>
      tpu.vector_store %arg4[%c0_13, %c0_14], %17 {strides = array<i32>} : memref<256x1xf32, #tpu.memory_space<vmem>>, vector<256x1xf32>,
    } else {
    }
    return
  }
  func.func @transform_0(%arg0: i32, %arg1: i32) -> (i32, i32) {
    %c0_i32 = arith.constant 0 : i32
    return %arg0, %arg1 : i32, i32
  }
  func.func @transform_1(%arg0: i32, %arg1: i32) -> (i32, i32) {
    %c0_i32 = arith.constant 0 : i32
    return %arg0, %arg1 : i32, i32
  }
  func.func @transform_2(%arg0: i32, %arg1: i32) -> (i32, i32) {
    %c0_i32 = arith.constant 0 : i32
    %c0_i32_0 = arith.constant 0 : i32
    return %arg0, %c0_i32 : i32, i32
  }
}

</mosaic_0001>

<llo_original>
// kernel: tpu_custom_call.1
$region0: #{tpu_custom_call.1}
  #allocation0 [shape = 'u32[]', space=smem, size = 0x4, offset = 0x4, fixed_abs, tag = 'smem constant byte address 0x4 - core index']
  #allocation1 [shape = 'u32[72,128]{1,0:T(1,128)}', space=vmem, size = 0x9000, scoped, tag = 'internal scratch']
  %s0 = inlined_call_operand.hbm [shape: f32[512,512], index: 0, kind: input, shape index: {}]
  %s1 = inlined_call_operand.hbm [shape: bf16[512,512], index: 1, kind: output, shape index: {0}]
  %s2 = inlined_call_operand.vmem [shape: f32[512,1], index: 2, kind: output, shape index: {1}]
  %3 = xla_tuple %s1, %s2
  %s4 = sld [smem:[#allocation0]]
  $region57: #{tpu_custom_call.1} parent=0
    _
  %s6 = ssub.s32 1, %s4
  %s7 = scalar_select 0, %s6, %s4
  $region1: #{tpu_custom_call.1} parent=0
    #allocation2 [shape = 'u8[1048576]{0}', space=vmem, size = 0x100000, scoped, tag = 'input window, operand 0']
    #allocation3 [shape = 's32[2]{0}', space=sflag, size = 0x8, scoped, tag = 'scoped memory for tpu_custom_call.1']
    #allocation4 [shape = 's32[2]{0}', space=sflag, size = 0x8, scoped, tag = 'scoped memory for tpu_custom_call.1']
    #allocation5 [shape = 'u8[524288]{0}', space=vmem, size = 0x80000, scoped, tag = 'output window, operand 0']
    %8 = vsyncpa [#allocation3], 0
    %s9 = scalar_lea.sflag [#allocation3], 1
    %10 = vsyncpa %s9, 0
    %11 = vsyncpa [#allocation4], 0
    %s12 = scalar_lea.sflag [#allocation4], 1
    %13 = vsyncpa %s12, 0
    loop: start=0, step=1, limit=4
    $region2: #{tpu_custom_call.1} parent=1 // loop_pre_header
      _
    $region3: #{tpu_custom_call.1} parent=1 // loop_header
      %s15 = sphi 0, %s19
      %p16 = scmp.ge.s32.totalorder %s15, 4
      %s22 = sphi 0, %s34
      %s23 = sphi 0, %s30
      %s24 = sphi 0, %s22
      %s25 = sphi 0, %s23
      %s26 = sphi 0, %s24
      %s27 = sphi 0, %s25
      %s39 = sphi 0, %s41
      %s42 = sphi 0, %s39
      %s43 = sphi 0, %s42
      %s59 = sphi 0, %s43
      %s67 = sphi 0, %s69
      %s70 = sphi 0, %s67
      %s71 = sphi 0, %s70
      %s87 = sphi 0, %s71
      %s93 = sphi 0, %s95
      %s96 = sphi 0, %s93
      %s97 = sphi 0, %s96
      %s113 = sphi 0, %s97
    $region4: #{tpu_custom_call.1} parent=1 // loop_header_branch
      %18 = sbr.rel (%p16) target = $region8
    $region5: #{tpu_custom_call.1} parent=1 // loop_body
      %s20 = ssub.s32 %s15, 1
      %s21 = ssub.s32 %s15, 2
      %s28 = sadd.s32 1, %s23
      %p29 = scmp.ge.s32.totalorder %s28, 1
      %s30 = scalar_select %p29, 0, %s28
      %s31 = sadd.s32 1, %s22
      %s32 = scalar_select %p29, %s31, %s22
      %p33 = scmp.ge.s32.totalorder %s32, 2
      %s34 = scalar_select %p33, 0, %s32
      %s35 = ssub.s32 %s22, %s34
      %s36 = ssub.s32 %s23, %s30
      %s37 = sor.u32 %s35, %s36
      %p38 = scmp.eq.s32.totalorder %s37, 0
      %s40 = sadd.s32 %s39, 1
      %s41 = scalar_select %p38, %s39, %s40
      %p44 = pneg %p38
      %p45 = scmp.eq.s32.totalorder %s15, 1
      %p46 = por %p44, %p45
      %p47 = scmp.ne.s32.totalorder %s39, %s42
      %p48 = scmp.eq.s32.totalorder %s15, 0
      %p49 = por %p47, %p48
      %p50 = scmp.ne.s32.totalorder %s39, %s42
      %p51 = scmp.eq.s32.totalorder %s20, 1
      %p52 = por %p50, %p51
      %p53 = scmp.ne.s32.totalorder %s42, %s43
      %p54 = scmp.eq.s32.totalorder %s20, 0
      %p55 = por %p53, %p54
      %p56 = scmp.ne.s32.totalorder %s42, %s43
      %p57 = scmp.eq.s32.totalorder %s21, 1
      %p58 = por %p56, %p57
      %p60 = scmp.ne.s32.totalorder %s43, %s59
      %p61 = scmp.eq.s32.totalorder %s21, 0
      %p62 = por %p60, %p61
      %s63 = ssub.s32 %s22, %s34
      %s64 = ssub.s32 %s23, %s30
      %s65 = sor.u32 %s63, %s64
      %p66 = scmp.eq.s32.totalorder %s65, 0
      %s68 = sadd.s32 %s67, 1
      %s69 = scalar_select %p66, %s67, %s68
      %p72 = pneg %p66
      %p73 = scmp.eq.s32.totalorder %s15, 1
      %p74 = por %p72, %p73
      %p75 = scmp.ne.s32.totalorder %s67, %s70
      %p76 = scmp.eq.s32.totalorder %s15, 0
      %p77 = por %p75, %p76
      %p78 = scmp.ne.s32.totalorder %s67, %s70
      %p79 = scmp.eq.s32.totalorder %s20, 1
      %p80 = por %p78, %p79
      %p81 = scmp.ne.s32.totalorder %s70, %s71
      %p82 = scmp.eq.s32.totalorder %s20, 0
      %p83 = por %p81, %p82
      %p84 = scmp.ne.s32.totalorder %s70, %s71
      %p85 = scmp.eq.s32.totalorder %s21, 1
      %p86 = por %p84, %p85
      %p88 = scmp.ne.s32.totalorder %s71, %s87
      %p89 = scmp.eq.s32.totalorder %s21, 0
      %p90 = por %p88, %p89
      %s91 = ssub.s32 %s22, %s34
      %p92 = scmp.eq.s32.totalorder %s91, 0
      %s94 = sadd.s32 %s93, 1
      %s95 = scalar_select %p92, %s93, %s94
      %p98 = pneg %p92
      %p99 = scmp.eq.s32.totalorder %s15, 1
      %p100 = por %p98, %p99
      %p101 = scmp.ne.s32.totalorder %s93, %s96
      %p102 = scmp.eq.s32.totalorder %s15, 0
      %p103 = por %p101, %p102
      %p104 = scmp.ne.s32.totalorder %s93, %s96
      %p105 = scmp.eq.s32.totalorder %s20, 1
      %p106 = por %p104, %p105
      %p107 = scmp.ne.s32.totalorder %s96, %s97
      %p108 = scmp.eq.s32.totalorder %s20, 0
      %p109 = por %p107, %p108
      %p110 = scmp.ne.s32.totalorder %s96, %s97
      %p111 = scmp.eq.s32.totalorder %s21, 1
      %p112 = por %p110, %p111
      %p114 = scmp.ne.s32.totalorder %s97, %s113
      %p115 = scmp.eq.s32.totalorder %s21, 0
      %p116 = por %p114, %p115
      %p117 = scmp.le.s32.totalorder 1, %s15
      %p118 = scmp.lt.s32.totalorder %s15, 3
      %p119 = pnand %p117, %p118
      %p120 = pneg %p119
      // Predicated region
      $region9: #{tpu_custom_call.1} parent=5 // pred_check
        _
      $region10: #{tpu_custom_call.1} parent=5 // pred_check_branch
        %122 = sbr.rel (%p119) target = $region12
      $region11: #{tpu_custom_call.1} parent=5 // pred_region
        %s123 = ssub.s32 %s15, 1
      $region12: #{tpu_custom_call.1} parent=5 // pred_fallthru
        _
      %p124 = scmp.lt.s32.totalorder %s15, 2
      // Predicated region
      $region13: #{tpu_custom_call.1} parent=5 // pred_check
        %p125 = pneg %p124
      $region14: #{tpu_custom_call.1} parent=5 // pred_check_branch
        %127 = sbr.rel (%p125) target = $region16
      $region15: #{tpu_custom_call.1} parent=5 // pred_region
        // Predicated region
        $region17: #{tpu_custom_call.1} parent=15 // pred_check
          %p128 = pneg %p49
        $region18: #{tpu_custom_call.1} parent=15 // pred_check_branch
          %130 = sbr.rel (%p128) target = $region20
        $region19: #{tpu_custom_call.1} parent=15 // pred_region
          %s131 = sand.u32 %s39, 1
          %s132 = scalar_lea.sflag [#allocation3], %s131
          %s133 = sand.u32 %s39, 1
          %s134 = smul.addr %s133, 1024
          %s135 = scalar_lea.vmem [#allocation2], %s134
          %s136 = smul.u32 32, %s22
          %s137 = smul.u32 4, %s23
          %139 = vsyncadd %s132, 0
          %s140 = smul.addr %s136, 4
          %s141 = sadd.s32 %s137, %s140
          %s142 = smul.addr %s141, 8
          %s143 = scalar_lea.hbm %s0, %s142
          %s144 = sshll.u32 %s143, 4
          %s145 = int_to_ptr.hbm [resolvable:$true] %s144
          %s146 = sshll.u32 %s135, 4
          %s147 = int_to_ptr.vmem [resolvable:$true] %s146
          %152 = dma.hbm_to_vmem [thread:$0]  %s145, 16384, %s147, %s132, 512, 512, 32
        $region20: #{tpu_custom_call.1} parent=15 // pred_fallthru
          _
      $region16: #{tpu_custom_call.1} parent=5 // pred_fallthru
        _
      %p153 = scmp.le.s32.totalorder 1, %s15
      %p154 = scmp.lt.s32.totalorder %s15, 3
      %p155 = pnand %p153, %p154
      %p156 = pneg %p155
      // Predicated region
      $region21: #{tpu_custom_call.1} parent=5 // pred_check
        _
      $region22: #{tpu_custom_call.1} parent=5 // pred_check_branch
        %158 = sbr.rel (%p155) target = $region24
      $region23: #{tpu_custom_call.1} parent=5 // pred_region
        %s159 = ssub.s32 %s15, 1
        %s160 = sand.u32 %s42, 1
        %s161 = scalar_lea.sflag [#allocation3], %s160
        %s162 = sand.u32 %s42, 1
        %s163 = smul.addr %s162, 1024
        %s164 = scalar_lea.vmem [#allocation2], %s163
        // Predicated region
        $region25: #{tpu_custom_call.1} parent=23 // pred_check
          %p165 = pneg %p55
        $region26: #{tpu_custom_call.1} parent=23 // pred_check_branch
          %167 = sbr.rel (%p165) target = $region28
        $region27: #{tpu_custom_call.1} parent=23 // pred_region
          %169 = dma.done %s161, 16384
        $region28: #{tpu_custom_call.1} parent=23 // pred_fallthru
          _
        %s170 = sand.u32 %s42, 1
        %s171 = scalar_lea.sflag [#allocation3], %s170
        %s172 = sand.u32 %s42, 1
        %s173 = smul.addr %s172, 1024
        %s174 = scalar_lea.vmem [#allocation2], %s173
        %p175 = pneg %p55
        %p176 = pneg %p52
        %p177 = pneg %p83
        %p178 = pneg %p80
        %s179 = sand.u32 %s70, 1
        %s180 = scalar_lea.sflag [#allocation4], %s179
        %s181 = sand.u32 %s70, 1
        %s182 = smul.addr %s181, 512
        %s183 = scalar_lea.vmem [#allocation5], %s182
        %p184 = pneg %p109
        %p185 = pneg %p106
        %s186 = smul.u32 32, %s24
        %p187 = scmp.lt.s32.totalorder %s186, 63
        %s188 = scalar_select %p187, %s186, 63
        %s189 = smul.addr %s188, 8
        %s190 = scalar_lea.vmem %s2, %s189
        %s191 = smul.u32 32, %s24
        %s192 = smul.u32 4, %s25
        %s193 = smul.u32 32, %s24
        %s194 = smul.u32 4, %s25
        %s195 = smul.u32 32, %s24
        %p196 = scmp.lt.s32.totalorder %s195, 63
        %s197 = scalar_select %p196, %s195, 63
        %s198 = smul.addr %s197, 8
        %s199 = scalar_lea.vmem %s2, %s198
        %s200 = smul.u32 32, %s24
        %v201 = vld [vmem:[%s164] sm:$0xff]
        %v202 = vld [vmem:[%s164 + $0x8] sm:$0xff]
        %v203 = vld [vmem:[%s164 + $0x10] sm:$0xff]
        %v204 = vld [vmem:[%s164 + $0x18] sm:$0xff]
        %v205 = vld [vmem:[%s164 + $0x20] sm:$0xff]
        %v206 = vld [vmem:[%s164 + $0x28] sm:$0xff]
        %v207 = vld [vmem:[%s164 + $0x30] sm:$0xff]
        %v208 = vld [vmem:[%s164 + $0x38] sm:$0xff]
        %v209 = vld [vmem:[%s164 + $0x40] sm:$0xff]
        %v210 = vld [vmem:[%s164 + $0x48] sm:$0xff]
        %v211 = vld [vmem:[%s164 + $0x50] sm:$0xff]
        %v212 = vld [vmem:[%s164 + $0x58] sm:$0xff]
        %v213 = vld [vmem:[%s164 + $0x60] sm:$0xff]
        %v214 = vld [vmem:[%s164 + $0x68] sm:$0xff]
        %v215 = vld [vmem:[%s164 + $0x70] sm:$0xff]
        %v216 = vld [vmem:[%s164 + $0x78] sm:$0xff]
        %v217 = vld [vmem:[%s164 + $0x80] sm:$0xff]
        %v218 = vld [vmem:[%s164 + $0x88] sm:$0xff]
        %v219 = vld [vmem:[%s164 + $0x90] sm:$0xff]
        %v220 = vld [vmem:[%s164 + $0x98] sm:$0xff]
        %v221 = vld [vmem:[%s164 + $0xa0] sm:$0xff]
        %v222 = vld [vmem:[%s164 + $0xa8] sm:$0xff]
        %v223 = vld [vmem:[%s164 + $0xb0] sm:$0xff]
        %v224 = vld [vmem:[%s164 + $0xb8] sm:$0xff]
        %v225 = vld [vmem:[%s164 + $0xc0] sm:$0xff]
        %v226 = vld [vmem:[%s164 + $0xc8] sm:$0xff]
        %v227 = vld [vmem:[%s164 + $0xd0] sm:$0xff]
        %v228 = vld [vmem:[%s164 + $0xd8] sm:$0xff]
        %v229 = vld [vmem:[%s164 + $0xe0] sm:$0xff]
        %v230 = vld [vmem:[%s164 + $0xe8] sm:$0xff]
        %v231 = vld [vmem:[%s164 + $0xf0] sm:$0xff]
        %v232 = vld [vmem:[%s164 + $0xf8] sm:$0xff]
        %v233 = vld [vmem:[%s164 + $0x100] sm:$0xff]
        %v234 = vld [vmem:[%s164 + $0x108] sm:$0xff]
        %v235 = vld [vmem:[%s164 + $0x110] sm:$0xff]
        %v236 = vld [vmem:[%s164 + $0x118] sm:$0xff]
        %v237 = vld [vmem:[%s164 + $0x120] sm:$0xff]
        %v238 = vld [vmem:[%s164 + $0x128] sm:$0xff]
        %v239 = vld [vmem:[%s164 + $0x130] sm:$0xff]
        %v240 = vld [vmem:[%s164 + $0x138] sm:$0xff]
        %v241 = vld [vmem:[%s164 + $0x140] sm:$0xff]
        %v242 = vld [vmem:[%s164 + $0x148] sm:$0xff]
        %v243 = vld [vmem:[%s164 + $0x150] sm:$0xff]
        %v244 = vld [vmem:[%s164 + $0x158] sm:$0xff]
        %v245 = vld [vmem:[%s164 + $0x160] sm:$0xff]
        %v246 = vld [vmem:[%s164 + $0x168] sm:$0xff]
        %v247 = vld [vmem:[%s164 + $0x170] sm:$0xff]
        %v248 = vld [vmem:[%s164 + $0x178] sm:$0xff]
        %v249 = vld [vmem:[%s164 + $0x180] sm:$0xff]
        %v250 = vld [vmem:[%s164 + $0x188] sm:$0xff]
        %v251 = vld [vmem:[%s164 + $0x190] sm:$0xff]
        %v252 = vld [vmem:[%s164 + $0x198] sm:$0xff]
        %v253 = vld [vmem:[%s164 + $0x1a0] sm:$0xff]
        %v254 = vld [vmem:[%s164 + $0x1a8] sm:$0xff]
        %v255 = vld [vmem:[%s164 + $0x1b0] sm:$0xff]
        %v256 = vld [vmem:[%s164 + $0x1b8] sm:$0xff]
        %v257 = vld [vmem:[%s164 + $0x1c0] sm:$0xff]
        %v258 = vld [vmem:[%s164 + $0x1c8] sm:$0xff]
        %v259 = vld [vmem:[%s164 + $0x1d0] sm:$0xff]
        %v260 = vld [vmem:[%s164 + $0x1d8] sm:$0xff]
        %v261 = vld [vmem:[%s164 + $0x1e0] sm:$0xff]
        %v262 = vld [vmem:[%s164 + $0x1e8] sm:$0xff]
        %v263 = vld [vmem:[%s164 + $0x1f0] sm:$0xff]
        %v264 = vld [vmem:[%s164 + $0x1f8] sm:$0xff]
        %v265 = vld [vmem:[%s164 + $0x200] sm:$0xff]
        %v266 = vld [vmem:[%s164 + $0x208] sm:$0xff]
        %v267 = vld [vmem:[%s164 + $0x210] sm:$0xff]
        %v268 = vld [vmem:[%s164 + $0x218] sm:$0xff]
        %v269 = vld [vmem:[%s164 + $0x220] sm:$0xff]
        %v270 = vld [vmem:[%s164 + $0x228] sm:$0xff]
        %v271 = vld [vmem:[%s164 + $0x230] sm:$0xff]
        %v272 = vld [vmem:[%s164 + $0x238] sm:$0xff]
        %v273 = vld [vmem:[%s164 + $0x240] sm:$0xff]
        %v274 = vld [vmem:[%s164 + $0x248] sm:$0xff]
        %v275 = vld [vmem:[%s164 + $0x250] sm:$0xff]
        %v276 = vld [vmem:[%s164 + $0x258] sm:$0xff]
        %v277 = vld [vmem:[%s164 + $0x260] sm:$0xff]
        %v278 = vld [vmem:[%s164 + $0x268] sm:$0xff]
        %v279 = vld [vmem:[%s164 + $0x270] sm:$0xff]
        %v280 = vld [vmem:[%s164 + $0x278] sm:$0xff]
        %v281 = vld [vmem:[%s164 + $0x280] sm:$0xff]
        %v282 = vld [vmem:[%s164 + $0x288] sm:$0xff]
        %v283 = vld [vmem:[%s164 + $0x290] sm:$0xff]
        %v284 = vld [vmem:[%s164 + $0x298] sm:$0xff]
        %v285 = vld [vmem:[%s164 + $0x2a0] sm:$0xff]
        %v286 = vld [vmem:[%s164 + $0x2a8] sm:$0xff]
        %v287 = vld [vmem:[%s164 + $0x2b0] sm:$0xff]
        %v288 = vld [vmem:[%s164 + $0x2b8] sm:$0xff]
        %v289 = vld [vmem:[%s164 + $0x2c0] sm:$0xff]
        %v290 = vld [vmem:[%s164 + $0x2c8] sm:$0xff]
        %v291 = vld [vmem:[%s164 + $0x2d0] sm:$0xff]
        %v292 = vld [vmem:[%s164 + $0x2d8] sm:$0xff]
        %v293 = vld [vmem:[%s164 + $0x2e0] sm:$0xff]
        %v294 = vld [vmem:[%s164 + $0x2e8] sm:$0xff]
        %v295 = vld [vmem:[%s164 + $0x2f0] sm:$0xff]
        %v296 = vld [vmem:[%s164 + $0x2f8] sm:$0xff]
        %v297 = vld [vmem:[%s164 + $0x300] sm:$0xff]
        %v298 = vld [vmem:[%s164 + $0x308] sm:$0xff]
        %v299 = vld [vmem:[%s164 + $0x310] sm:$0xff]
        %v300 = vld [vmem:[%s164 + $0x318] sm:$0xff]
        %v301 = vld [vmem:[%s164 + $0x320] sm:$0xff]
        %v302 = vld [vmem:[%s164 + $0x328] sm:$0xff]
        %v303 = vld [vmem:[%s164 + $0x330] sm:$0xff]
        %v304 = vld [vmem:[%s164 + $0x338] sm:$0xff]
        %v305 = vld [vmem:[%s164 + $0x340] sm:$0xff]
        %v306 = vld [vmem:[%s164 + $0x348] sm:$0xff]
        %v307 = vld [vmem:[%s164 + $0x350] sm:$0xff]
        %v308 = vld [vmem:[%s164 + $0x358] sm:$0xff]
        %v309 = vld [vmem:[%s164 + $0x360] sm:$0xff]
        %v310 = vld [vmem:[%s164 + $0x368] sm:$0xff]
        %v311 = vld [vmem:[%s164 + $0x370] sm:$0xff]
        %v312 = vld [vmem:[%s164 + $0x378] sm:$0xff]
        %v313 = vld [vmem:[%s164 + $0x380] sm:$0xff]
        %v314 = vld [vmem:[%s164 + $0x388] sm:$0xff]
        %v315 = vld [vmem:[%s164 + $0x390] sm:$0xff]
        %v316 = vld [vmem:[%s164 + $0x398] sm:$0xff]
        %v317 = vld [vmem:[%s164 + $0x3a0] sm:$0xff]
        %v318 = vld [vmem:[%s164 + $0x3a8] sm:$0xff]
        %v319 = vld [vmem:[%s164 + $0x3b0] sm:$0xff]
        %v320 = vld [vmem:[%s164 + $0x3b8] sm:$0xff]
        %v321 = vld [vmem:[%s164 + $0x3c0] sm:$0xff]
        %v322 = vld [vmem:[%s164 + $0x3c8] sm:$0xff]
        %v323 = vld [vmem:[%s164 + $0x3d0] sm:$0xff]
        %v324 = vld [vmem:[%s164 + $0x3d8] sm:$0xff]
        %v325 = vld [vmem:[%s164 + $0x3e0] sm:$0xff]
        %v326 = vld [vmem:[%s164 + $0x3e8] sm:$0xff]
        %v327 = vld [vmem:[%s164 + $0x3f0] sm:$0xff]
        %v328 = vld [vmem:[%s164 + $0x3f8] sm:$0xff]
        %v329 = vpack.c.bf16 %v202, %v201
        %v330 = vpack.c.bf16 %v204, %v203
        %v331 = vpack.c.bf16 %v206, %v205
        %v332 = vpack.c.bf16 %v208, %v207
        %v333 = vpack.c.bf16 %v210, %v209
        %v334 = vpack.c.bf16 %v212, %v211
        %v335 = vpack.c.bf16 %v214, %v213
        %v336 = vpack.c.bf16 %v216, %v215
        %v337 = vpack.c.bf16 %v218, %v217
        %v338 = vpack.c.bf16 %v220, %v219
        %v339 = vpack.c.bf16 %v222, %v221
        %v340 = vpack.c.bf16 %v224, %v223
        %v341 = vpack.c.bf16 %v226, %v225
        %v342 = vpack.c.bf16 %v228, %v227
        %v343 = vpack.c.bf16 %v230, %v229
        %v344 = vpack.c.bf16 %v232, %v231
        %v345 = vpack.c.bf16 %v234, %v233
        %v346 = vpack.c.bf16 %v236, %v235
        %v347 = vpack.c.bf16 %v238, %v237
        %v348 = vpack.c.bf16 %v240, %v239
        %v349 = vpack.c.bf16 %v242, %v241
        %v350 = vpack.c.bf16 %v244, %v243
        %v351 = vpack.c.bf16 %v246, %v245
        %v352 = vpack.c.bf16 %v248, %v247
        %v353 = vpack.c.bf16 %v250, %v249
        %v354 = vpack.c.bf16 %v252, %v251
        %v355 = vpack.c.bf16 %v254, %v253
        %v356 = vpack.c.bf16 %v256, %v255
        %v357 = vpack.c.bf16 %v258, %v257
        %v358 = vpack.c.bf16 %v260, %v259
        %v359 = vpack.c.bf16 %v262, %v261
        %v360 = vpack.c.bf16 %v264, %v263
        %v361 = vpack.c.bf16 %v266, %v265
        %v362 = vpack.c.bf16 %v268, %v267
        %v363 = vpack.c.bf16 %v270, %v269
        %v364 = vpack.c.bf16 %v272, %v271
        %v365 = vpack.c.bf16 %v274, %v273
        %v366 = vpack.c.bf16 %v276, %v275
        %v367 = vpack.c.bf16 %v278, %v277
        %v368 = vpack.c.bf16 %v280, %v279
        %v369 = vpack.c.bf16 %v282, %v281
        %v370 = vpack.c.bf16 %v284, %v283
        %v371 = vpack.c.bf16 %v286, %v285
        %v372 = vpack.c.bf16 %v288, %v287
        %v373 = vpack.c.bf16 %v290, %v289
        %v374 = vpack.c.bf16 %v292, %v291
        %v375 = vpack.c.bf16 %v294, %v293
        %v376 = vpack.c.bf16 %v296, %v295
        %v377 = vpack.c.bf16 %v298, %v297
        %v378 = vpack.c.bf16 %v300, %v299
        %v379 = vpack.c.bf16 %v302, %v301
        %v380 = vpack.c.bf16 %v304, %v303
        %v381 = vpack.c.bf16 %v306, %v305
        %v382 = vpack.c.bf16 %v308, %v307
        %v383 = vpack.c.bf16 %v310, %v309
        %v384 = vpack.c.bf16 %v312, %v311
        %v385 = vpack.c.bf16 %v314, %v313
        %v386 = vpack.c.bf16 %v316, %v315
        %v387 = vpack.c.bf16 %v318, %v317
        %v388 = vpack.c.bf16 %v320, %v319
        %v389 = vpack.c.bf16 %v322, %v321
        %v390 = vpack.c.bf16 %v324, %v323
        %v391 = vpack.c.bf16 %v326, %v325
        %v392 = vpack.c.bf16 %v328, %v327
        %393 = vst [vmem:[%s183] sm:$0xff] %v329
        %394 = vst [vmem:[%s183 + $0x8] sm:$0xff] %v330
        %395 = vst [vmem:[%s183 + $0x10] sm:$0xff] %v331
        %396 = vst [vmem:[%s183 + $0x18] sm:$0xff] %v332
        %397 = vst [vmem:[%s183 + $0x20] sm:$0xff] %v333
        %398 = vst [vmem:[%s183 + $0x28] sm:$0xff] %v334
        %399 = vst [vmem:[%s183 + $0x30] sm:$0xff] %v335
        %400 = vst [vmem:[%s183 + $0x38] sm:$0xff] %v336
        %401 = vst [vmem:[%s183 + $0x40] sm:$0xff] %v337
        %402 = vst [vmem:[%s183 + $0x48] sm:$0xff] %v338
        %403 = vst [vmem:[%s183 + $0x50] sm:$0xff] %v339
        %404 = vst [vmem:[%s183 + $0x58] sm:$0xff] %v340
        %405 = vst [vmem:[%s183 + $0x60] sm:$0xff] %v341
        %406 = vst [vmem:[%s183 + $0x68] sm:$0xff] %v342
        %407 = vst [vmem:[%s183 + $0x70] sm:$0xff] %v343
        %408 = vst [vmem:[%s183 + $0x78] sm:$0xff] %v344
        %409 = vst [vmem:[%s183 + $0x80] sm:$0xff] %v345
        %410 = vst [vmem:[%s183 + $0x88] sm:$0xff] %v346
        %411 = vst [vmem:[%s183 + $0x90] sm:$0xff] %v347
        %412 = vst [vmem:[%s183 + $0x98] sm:$0xff] %v348
        %413 = vst [vmem:[%s183 + $0xa0] sm:$0xff] %v349
        %414 = vst [vmem:[%s183 + $0xa8] sm:$0xff] %v350
        %415 = vst [vmem:[%s183 + $0xb0] sm:$0xff] %v351
        %416 = vst [vmem:[%s183 + $0xb8] sm:$0xff] %v352
        %417 = vst [vmem:[%s183 + $0xc0] sm:$0xff] %v353
        %418 = vst [vmem:[%s183 + $0xc8] sm:$0xff] %v354
        %419 = vst [vmem:[%s183 + $0xd0] sm:$0xff] %v355
        %420 = vst [vmem:[%s183 + $0xd8] sm:$0xff] %v356
        %421 = vst [vmem:[%s183 + $0xe0] sm:$0xff] %v357
        %422 = vst [vmem:[%s183 + $0xe8] sm:$0xff] %v358
        %423 = vst [vmem:[%s183 + $0xf0] sm:$0xff] %v359
        %424 = vst [vmem:[%s183 + $0xf8] sm:$0xff] %v360
        %425 = vst [vmem:[%s183 + $0x100] sm:$0xff] %v361
        %426 = vst [vmem:[%s183 + $0x108] sm:$0xff] %v362
        %427 = vst [vmem:[%s183 + $0x110] sm:$0xff] %v363
        %428 = vst [vmem:[%s183 + $0x118] sm:$0xff] %v364
        %429 = vst [vmem:[%s183 + $0x120] sm:$0xff] %v365
        %430 = vst [vmem:[%s183 + $0x128] sm:$0xff] %v366
        %431 = vst [vmem:[%s183 + $0x130] sm:$0xff] %v367
        %432 = vst [vmem:[%s183 + $0x138] sm:$0xff] %v368
        %433 = vst [vmem:[%s183 + $0x140] sm:$0xff] %v369
        %434 = vst [vmem:[%s183 + $0x148] sm:$0xff] %v370
        %435 = vst [vmem:[%s183 + $0x150] sm:$0xff] %v371
        %436 = vst [vmem:[%s183 + $0x158] sm:$0xff] %v372
        %437 = vst [vmem:[%s183 + $0x160] sm:$0xff] %v373
        %438 = vst [vmem:[%s183 + $0x168] sm:$0xff] %v374
        %439 = vst [vmem:[%s183 + $0x170] sm:$0xff] %v375
        %440 = vst [vmem:[%s183 + $0x178] sm:$0xff] %v376
        %441 = vst [vmem:[%s183 + $0x180] sm:$0xff] %v377
        %442 = vst [vmem:[%s183 + $0x188] sm:$0xff] %v378
        %443 = vst [vmem:[%s183 + $0x190] sm:$0xff] %v379
        %444 = vst [vmem:[%s183 + $0x198] sm:$0xff] %v380
        %445 = vst [vmem:[%s183 + $0x1a0] sm:$0xff] %v381
        %446 = vst [vmem:[%s183 + $0x1a8] sm:$0xff] %v382
        %447 = vst [vmem:[%s183 + $0x1b0] sm:$0xff] %v383
        %448 = vst [vmem:[%s183 + $0x1b8] sm:$0xff] %v384
        %449 = vst [vmem:[%s183 + $0x1c0] sm:$0xff] %v385
        %450 = vst [vmem:[%s183 + $0x1c8] sm:$0xff] %v386
        %451 = vst [vmem:[%s183 + $0x1d0] sm:$0xff] %v387
        %452 = vst [vmem:[%s183 + $0x1d8] sm:$0xff] %v388
        %453 = vst [vmem:[%s183 + $0x1e0] sm:$0xff] %v389
        %454 = vst [vmem:[%s183 + $0x1e8] sm:$0xff] %v390
        %455 = vst [vmem:[%s183 + $0x1f0] sm:$0xff] %v391
        %456 = vst [vmem:[%s183 + $0x1f8] sm:$0xff] %v392
        %p457 = scmp.eq.s32.totalorder %s25, 0
        // Predicated region
        $region29: #{tpu_custom_call.1} parent=23 // pred_check
          %p458 = pneg %p457
        $region30: #{tpu_custom_call.1} parent=23 // pred_check_branch
          %460 = sbr.rel (%p458) target = $region32
        $region31: #{tpu_custom_call.1} parent=23 // pred_region
          %vm461 = vcmask 7168
          %462 = vst.msk [vmem:[%s199] sm:$0xff] %vm461, 0.0
          %463 = vst.msk [vmem:[%s199 + $0x8] sm:$0xff] %vm461, 0.0
          %464 = vst.msk [vmem:[%s199 + $0x10] sm:$0xff] %vm461, 0.0
          %465 = vst.msk [vmem:[%s199 + $0x18] sm:$0xff] %vm461, 0.0
          %466 = vst.msk [vmem:[%s199 + $0x20] sm:$0xff] %vm461, 0.0
          %467 = vst.msk [vmem:[%s199 + $0x28] sm:$0xff] %vm461, 0.0
          %468 = vst.msk [vmem:[%s199 + $0x30] sm:$0xff] %vm461, 0.0
          %469 = vst.msk [vmem:[%s199 + $0x38] sm:$0xff] %vm461, 0.0
          %470 = vst.msk [vmem:[%s199 + $0x40] sm:$0xff] %vm461, 0.0
          %471 = vst.msk [vmem:[%s199 + $0x48] sm:$0xff] %vm461, 0.0
          %472 = vst.msk [vmem:[%s199 + $0x50] sm:$0xff] %vm461, 0.0
          %473 = vst.msk [vmem:[%s199 + $0x58] sm:$0xff] %vm461, 0.0
          %474 = vst.msk [vmem:[%s199 + $0x60] sm:$0xff] %vm461, 0.0
          %475 = vst.msk [vmem:[%s199 + $0x68] sm:$0xff] %vm461, 0.0
          %476 = vst.msk [vmem:[%s199 + $0x70] sm:$0xff] %vm461, 0.0
          %477 = vst.msk [vmem:[%s199 + $0x78] sm:$0xff] %vm461, 0.0
          %478 = vst.msk [vmem:[%s199 + $0x80] sm:$0xff] %vm461, 0.0
          %479 = vst.msk [vmem:[%s199 + $0x88] sm:$0xff] %vm461, 0.0
          %480 = vst.msk [vmem:[%s199 + $0x90] sm:$0xff] %vm461, 0.0
          %481 = vst.msk [vmem:[%s199 + $0x98] sm:$0xff] %vm461, 0.0
          %482 = vst.msk [vmem:[%s199 + $0xa0] sm:$0xff] %vm461, 0.0
          %483 = vst.msk [vmem:[%s199 + $0xa8] sm:$0xff] %vm461, 0.0
          %484 = vst.msk [vmem:[%s199 + $0xb0] sm:$0xff] %vm461, 0.0
          %485 = vst.msk [vmem:[%s199 + $0xb8] sm:$0xff] %vm461, 0.0
          %486 = vst.msk [vmem:[%s199 + $0xc0] sm:$0xff] %vm461, 0.0
          %487 = vst.msk [vmem:[%s199 + $0xc8] sm:$0xff] %vm461, 0.0
          %488 = vst.msk [vmem:[%s199 + $0xd0] sm:$0xff] %vm461, 0.0
          %489 = vst.msk [vmem:[%s199 + $0xd8] sm:$0xff] %vm461, 0.0
          %490 = vst.msk [vmem:[%s199 + $0xe0] sm:$0xff] %vm461, 0.0
          %491 = vst.msk [vmem:[%s199 + $0xe8] sm:$0xff] %vm461, 0.0
          %492 = vst.msk [vmem:[%s199 + $0xf0] sm:$0xff] %vm461, 0.0
          %493 = vst.msk [vmem:[%s199 + $0xf8] sm:$0xff] %vm461, 0.0
        $region32: #{tpu_custom_call.1} parent=23 // pred_fallthru
          _
        %v494 = vld [vmem:[%s199] sm:$0xff]
        %v495 = vld [vmem:[%s199 + $0x8] sm:$0xff]
        %v496 = vld [vmem:[%s199 + $0x10] sm:$0xff]
        %v497 = vld [vmem:[%s199 + $0x18] sm:$0xff]
        %v498 = vld [vmem:[%s199 + $0x20] sm:$0xff]
        %v499 = vld [vmem:[%s199 + $0x28] sm:$0xff]
        %v500 = vld [vmem:[%s199 + $0x30] sm:$0xff]
        %v501 = vld [vmem:[%s199 + $0x38] sm:$0xff]
        %v502 = vld [vmem:[%s199 + $0x40] sm:$0xff]
        %v503 = vld [vmem:[%s199 + $0x48] sm:$0xff]
        %v504 = vld [vmem:[%s199 + $0x50] sm:$0xff]
        %v505 = vld [vmem:[%s199 + $0x58] sm:$0xff]
        %v506 = vld [vmem:[%s199 + $0x60] sm:$0xff]
        %v507 = vld [vmem:[%s199 + $0x68] sm:$0xff]
        %v508 = vld [vmem:[%s199 + $0x70] sm:$0xff]
        %v509 = vld [vmem:[%s199 + $0x78] sm:$0xff]
        %v510 = vld [vmem:[%s199 + $0x80] sm:$0xff]
        %v511 = vld [vmem:[%s199 + $0x88] sm:$0xff]
        %v512 = vld [vmem:[%s199 + $0x90] sm:$0xff]
        %v513 = vld [vmem:[%s199 + $0x98] sm:$0xff]
        %v514 = vld [vmem:[%s199 + $0xa0] sm:$0xff]
        %v515 = vld [vmem:[%s199 + $0xa8] sm:$0xff]
        %v516 = vld [vmem:[%s199 + $0xb0] sm:$0xff]
        %v517 = vld [vmem:[%s199 + $0xb8] sm:$0xff]
        %v518 = vld [vmem:[%s199 + $0xc0] sm:$0xff]
        %v519 = vld [vmem:[%s199 + $0xc8] sm:$0xff]
        %v520 = vld [vmem:[%s199 + $0xd0] sm:$0xff]
        %v521 = vld [vmem:[%s199 + $0xd8] sm:$0xff]
        %v522 = vld [vmem:[%s199 + $0xe0] sm:$0xff]
        %v523 = vld [vmem:[%s199 + $0xe8] sm:$0xff]
        %v524 = vld [vmem:[%s199 + $0xf0] sm:$0xff]
        %v525 = vld [vmem:[%s199 + $0xf8] sm:$0xff]
        %v526 = vadd.f32 %v201, %v202
        %v527 = vadd.f32 %v526, %v203
        %v528 = vadd.f32 %v527, %v204
        %529 = vadd.xlane.f32.xlu0 %v528
        %v530 = vpop.xlane.xlu0 %529
        %v531 = vadd.f32 %v205, %v206
        %v532 = vadd.f32 %v531, %v207
        %v533 = vadd.f32 %v532, %v208
        %534 = vadd.xlane.f32.xlu0 %v533
        %v535 = vpop.xlane.xlu0 %534
        %v536 = vadd.f32 %v209, %v210
        %v537 = vadd.f32 %v536, %v211
        %v538 = vadd.f32 %v537, %v212
        %539 = vadd.xlane.f32.xlu0 %v538
        %v540 = vpop.xlane.xlu0 %539
        %v541 = vadd.f32 %v213, %v214
        %v542 = vadd.f32 %v541, %v215
        %v543 = vadd.f32 %v542, %v216
        %544 = vadd.xlane.f32.xlu0 %v543
        %v545 = vpop.xlane.xlu0 %544
        %v546 = vadd.f32 %v217, %v218
        %v547 = vadd.f32 %v546, %v219
        %v548 = vadd.f32 %v547, %v220
        %549 = vadd.xlane.f32.xlu0 %v548
        %v550 = vpop.xlane.xlu0 %549
        %v551 = vadd.f32 %v221, %v222
        %v552 = vadd.f32 %v551, %v223
        %v553 = vadd.f32 %v552, %v224
        %554 = vadd.xlane.f32.xlu0 %v553
        %v555 = vpop.xlane.xlu0 %554
        %v556 = vadd.f32 %v225, %v226
        %v557 = vadd.f32 %v556, %v227
        %v558 = vadd.f32 %v557, %v228
        %559 = vadd.xlane.f32.xlu0 %v558
        %v560 = vpop.xlane.xlu0 %559
        %v561 = vadd.f32 %v229, %v230
        %v562 = vadd.f32 %v561, %v231
        %v563 = vadd.f32 %v562, %v232
        %564 = vadd.xlane.f32.xlu0 %v563
        %v565 = vpop.xlane.xlu0 %564
        %v566 = vadd.f32 %v233, %v234
        %v567 = vadd.f32 %v566, %v235
        %v568 = vadd.f32 %v567, %v236
        %569 = vadd.xlane.f32.xlu0 %v568
        %v570 = vpop.xlane.xlu0 %569
        %v571 = vadd.f32 %v237, %v238
        %v572 = vadd.f32 %v571, %v239
        %v573 = vadd.f32 %v572, %v240
        %574 = vadd.xlane.f32.xlu0 %v573
        %v575 = vpop.xlane.xlu0 %574
        %v576 = vadd.f32 %v241, %v242
        %v577 = vadd.f32 %v576, %v243
        %v578 = vadd.f32 %v577, %v244
        %579 = vadd.xlane.f32.xlu0 %v578
        %v580 = vpop.xlane.xlu0 %579
        %v581 = vadd.f32 %v245, %v246
        %v582 = vadd.f32 %v581, %v247
        %v583 = vadd.f32 %v582, %v248
        %584 = vadd.xlane.f32.xlu0 %v583
        %v585 = vpop.xlane.xlu0 %584
        %v586 = vadd.f32 %v249, %v250
        %v587 = vadd.f32 %v586, %v251
        %v588 = vadd.f32 %v587, %v252
        %589 = vadd.xlane.f32.xlu0 %v588
        %v590 = vpop.xlane.xlu0 %589
        %v591 = vadd.f32 %v253, %v254
        %v592 = vadd.f32 %v591, %v255
        %v593 = vadd.f32 %v592, %v256
        %594 = vadd.xlane.f32.xlu0 %v593
        %v595 = vpop.xlane.xlu0 %594
        %v596 = vadd.f32 %v257, %v258
        %v597 = vadd.f32 %v596, %v259
        %v598 = vadd.f32 %v597, %v260
        %599 = vadd.xlane.f32.xlu0 %v598
        %v600 = vpop.xlane.xlu0 %599
        %v601 = vadd.f32 %v261, %v262
        %v602 = vadd.f32 %v601, %v263
        %v603 = vadd.f32 %v602, %v264
        %604 = vadd.xlane.f32.xlu0 %v603
        %v605 = vpop.xlane.xlu0 %604
        %v606 = vadd.f32 %v265, %v266
        %v607 = vadd.f32 %v606, %v267
        %v608 = vadd.f32 %v607, %v268
        %609 = vadd.xlane.f32.xlu0 %v608
        %v610 = vpop.xlane.xlu0 %609
        %v611 = vadd.f32 %v269, %v270
        %v612 = vadd.f32 %v611, %v271
        %v613 = vadd.f32 %v612, %v272
        %614 = vadd.xlane.f32.xlu0 %v613
        %v615 = vpop.xlane.xlu0 %614
        %v616 = vadd.f32 %v273, %v274
        %v617 = vadd.f32 %v616, %v275
        %v618 = vadd.f32 %v617, %v276
        %619 = vadd.xlane.f32.xlu0 %v618
        %v620 = vpop.xlane.xlu0 %619
        %v621 = vadd.f32 %v277, %v278
        %v622 = vadd.f32 %v621, %v279
        %v623 = vadd.f32 %v622, %v280
        %624 = vadd.xlane.f32.xlu0 %v623
        %v625 = vpop.xlane.xlu0 %624
        %v626 = vadd.f32 %v281, %v282
        %v627 = vadd.f32 %v626, %v283
        %v628 = vadd.f32 %v627, %v284
        %629 = vadd.xlane.f32.xlu0 %v628
        %v630 = vpop.xlane.xlu0 %629
        %v631 = vadd.f32 %v285, %v286
        %v632 = vadd.f32 %v631, %v287
        %v633 = vadd.f32 %v632, %v288
        %634 = vadd.xlane.f32.xlu0 %v633
        %v635 = vpop.xlane.xlu0 %634
        %v636 = vadd.f32 %v289, %v290
        %v637 = vadd.f32 %v636, %v291
        %v638 = vadd.f32 %v637, %v292
        %639 = vadd.xlane.f32.xlu0 %v638
        %v640 = vpop.xlane.xlu0 %639
        %v641 = vadd.f32 %v293, %v294
        %v642 = vadd.f32 %v641, %v295
        %v643 = vadd.f32 %v642, %v296
        %644 = vadd.xlane.f32.xlu0 %v643
        %v645 = vpop.xlane.xlu0 %644
        %v646 = vadd.f32 %v297, %v298
        %v647 = vadd.f32 %v646, %v299
        %v648 = vadd.f32 %v647, %v300
        %649 = vadd.xlane.f32.xlu0 %v648
        %v650 = vpop.xlane.xlu0 %649
        %v651 = vadd.f32 %v301, %v302
        %v652 = vadd.f32 %v651, %v303
        %v653 = vadd.f32 %v652, %v304
        %654 = vadd.xlane.f32.xlu0 %v653
        %v655 = vpop.xlane.xlu0 %654
        %v656 = vadd.f32 %v305, %v306
        %v657 = vadd.f32 %v656, %v307
        %v658 = vadd.f32 %v657, %v308
        %659 = vadd.xlane.f32.xlu0 %v658
        %v660 = vpop.xlane.xlu0 %659
        %v661 = vadd.f32 %v309, %v310
        %v662 = vadd.f32 %v661, %v311
        %v663 = vadd.f32 %v662, %v312
        %664 = vadd.xlane.f32.xlu0 %v663
        %v665 = vpop.xlane.xlu0 %664
        %v666 = vadd.f32 %v313, %v314
        %v667 = vadd.f32 %v666, %v315
        %v668 = vadd.f32 %v667, %v316
        %669 = vadd.xlane.f32.xlu0 %v668
        %v670 = vpop.xlane.xlu0 %669
        %v671 = vadd.f32 %v317, %v318
        %v672 = vadd.f32 %v671, %v319
        %v673 = vadd.f32 %v672, %v320
        %674 = vadd.xlane.f32.xlu0 %v673
        %v675 = vpop.xlane.xlu0 %674
        %v676 = vadd.f32 %v321, %v322
        %v677 = vadd.f32 %v676, %v323
        %v678 = vadd.f32 %v677, %v324
        %679 = vadd.xlane.f32.xlu0 %v678
        %v680 = vpop.xlane.xlu0 %679
        %v681 = vadd.f32 %v325, %v326
        %v682 = vadd.f32 %v681, %v327
        %v683 = vadd.f32 %v682, %v328
        %684 = vadd.xlane.f32.xlu0 %v683
        %v685 = vpop.xlane.xlu0 %684
        %v686 = vadd.f32 %v494, %v530
        %v687 = vadd.f32 %v495, %v535
        %v688 = vadd.f32 %v496, %v540
        %v689 = vadd.f32 %v497, %v545
        %v690 = vadd.f32 %v498, %v550
        %v691 = vadd.f32 %v499, %v555
        %v692 = vadd.f32 %v500, %v560
        %v693 = vadd.f32 %v501, %v565
        %v694 = vadd.f32 %v502, %v570
        %v695 = vadd.f32 %v503, %v575
        %v696 = vadd.f32 %v504, %v580
        %v697 = vadd.f32 %v505, %v585
        %v698 = vadd.f32 %v506, %v590
        %v699 = vadd.f32 %v507, %v595
        %v700 = vadd.f32 %v508, %v600
        %v701 = vadd.f32 %v509, %v605
        %v702 = vadd.f32 %v510, %v610
        %v703 = vadd.f32 %v511, %v615
        %v704 = vadd.f32 %v512, %v620
        %v705 = vadd.f32 %v513, %v625
        %v706 = vadd.f32 %v514, %v630
        %v707 = vadd.f32 %v515, %v635
        %v708 = vadd.f32 %v516, %v640
        %v709 = vadd.f32 %v517, %v645
        %v710 = vadd.f32 %v518, %v650
        %v711 = vadd.f32 %v519, %v655
        %v712 = vadd.f32 %v520, %v660
        %v713 = vadd.f32 %v521, %v665
        %v714 = vadd.f32 %v522, %v670
        %v715 = vadd.f32 %v523, %v675
        %v716 = vadd.f32 %v524, %v680
        %v717 = vadd.f32 %v525, %v685
        %vm718 = vcmask 7168
        %719 = vst.msk [vmem:[%s199] sm:$0xff] %vm718, %v686
        %720 = vst.msk [vmem:[%s199 + $0x8] sm:$0xff] %vm718, %v687
        %721 = vst.msk [vmem:[%s199 + $0x10] sm:$0xff] %vm718, %v688
        %722 = vst.msk [vmem:[%s199 + $0x18] sm:$0xff] %vm718, %v689
        %723 = vst.msk [vmem:[%s199 + $0x20] sm:$0xff] %vm718, %v690
        %724 = vst.msk [vmem:[%s199 + $0x28] sm:$0xff] %vm718, %v691
        %725 = vst.msk [vmem:[%s199 + $0x30] sm:$0xff] %vm718, %v692
        %726 = vst.msk [vmem:[%s199 + $0x38] sm:$0xff] %vm718, %v693
        %727 = vst.msk [vmem:[%s199 + $0x40] sm:$0xff] %vm718, %v694
        %728 = vst.msk [vmem:[%s199 + $0x48] sm:$0xff] %vm718, %v695
        %729 = vst.msk [vmem:[%s199 + $0x50] sm:$0xff] %vm718, %v696
        %730 = vst.msk [vmem:[%s199 + $0x58] sm:$0xff] %vm718, %v697
        %731 = vst.msk [vmem:[%s199 + $0x60] sm:$0xff] %vm718, %v698
        %732 = vst.msk [vmem:[%s199 + $0x68] sm:$0xff] %vm718, %v699
        %733 = vst.msk [vmem:[%s199 + $0x70] sm:$0xff] %vm718, %v700
        %734 = vst.msk [vmem:[%s199 + $0x78] sm:$0xff] %vm718, %v701
        %735 = vst.msk [vmem:[%s199 + $0x80] sm:$0xff] %vm718, %v702
        %736 = vst.msk [vmem:[%s199 + $0x88] sm:$0xff] %vm718, %v703
        %737 = vst.msk [vmem:[%s199 + $0x90] sm:$0xff] %vm718, %v704
        %738 = vst.msk [vmem:[%s199 + $0x98] sm:$0xff] %vm718, %v705
        %739 = vst.msk [vmem:[%s199 + $0xa0] sm:$0xff] %vm718, %v706
        %740 = vst.msk [vmem:[%s199 + $0xa8] sm:$0xff] %vm718, %v707
        %741 = vst.msk [vmem:[%s199 + $0xb0] sm:$0xff] %vm718, %v708
        %742 = vst.msk [vmem:[%s199 + $0xb8] sm:$0xff] %vm718, %v709
        %743 = vst.msk [vmem:[%s199 + $0xc0] sm:$0xff] %vm718, %v710
        %744 = vst.msk [vmem:[%s199 + $0xc8] sm:$0xff] %vm718, %v711
        %745 = vst.msk [vmem:[%s199 + $0xd0] sm:$0xff] %vm718, %v712
        %746 = vst.msk [vmem:[%s199 + $0xd8] sm:$0xff] %vm718, %v713
        %747 = vst.msk [vmem:[%s199 + $0xe0] sm:$0xff] %vm718, %v714
        %748 = vst.msk [vmem:[%s199 + $0xe8] sm:$0xff] %vm718, %v715
        %749 = vst.msk [vmem:[%s199 + $0xf0] sm:$0xff] %vm718, %v716
        %750 = vst.msk [vmem:[%s199 + $0xf8] sm:$0xff] %vm718, %v717
        // Predicated region
        $region33: #{tpu_custom_call.1} parent=23 // pred_check
          %p751 = pneg %p457
        $region34: #{tpu_custom_call.1} parent=23 // pred_check_branch
          %753 = sbr.rel (%p751) target = $region36
        $region35: #{tpu_custom_call.1} parent=23 // pred_region
          %v754 = vld [vmem:[%s199] sm:$0xff]
          %v755 = vld [vmem:[%s199 + $0x8] sm:$0xff]
          %v756 = vld [vmem:[%s199 + $0x10] sm:$0xff]
          %v757 = vld [vmem:[%s199 + $0x18] sm:$0xff]
          %v758 = vld [vmem:[%s199 + $0x20] sm:$0xff]
          %v759 = vld [vmem:[%s199 + $0x28] sm:$0xff]
          %v760 = vld [vmem:[%s199 + $0x30] sm:$0xff]
          %v761 = vld [vmem:[%s199 + $0x38] sm:$0xff]
          %v762 = vld [vmem:[%s199 + $0x40] sm:$0xff]
          %v763 = vld [vmem:[%s199 + $0x48] sm:$0xff]
          %v764 = vld [vmem:[%s199 + $0x50] sm:$0xff]
          %v765 = vld [vmem:[%s199 + $0x58] sm:$0xff]
          %v766 = vld [vmem:[%s199 + $0x60] sm:$0xff]
          %v767 = vld [vmem:[%s199 + $0x68] sm:$0xff]
          %v768 = vld [vmem:[%s199 + $0x70] sm:$0xff]
          %v769 = vld [vmem:[%s199 + $0x78] sm:$0xff]
          %v770 = vld [vmem:[%s199 + $0x80] sm:$0xff]
          %v771 = vld [vmem:[%s199 + $0x88] sm:$0xff]
          %v772 = vld [vmem:[%s199 + $0x90] sm:$0xff]
          %v773 = vld [vmem:[%s199 + $0x98] sm:$0xff]
          %v774 = vld [vmem:[%s199 + $0xa0] sm:$0xff]
          %v775 = vld [vmem:[%s199 + $0xa8] sm:$0xff]
          %v776 = vld [vmem:[%s199 + $0xb0] sm:$0xff]
          %v777 = vld [vmem:[%s199 + $0xb8] sm:$0xff]
          %v778 = vld [vmem:[%s199 + $0xc0] sm:$0xff]
          %v779 = vld [vmem:[%s199 + $0xc8] sm:$0xff]
          %v780 = vld [vmem:[%s199 + $0xd0] sm:$0xff]
          %v781 = vld [vmem:[%s199 + $0xd8] sm:$0xff]
          %v782 = vld [vmem:[%s199 + $0xe0] sm:$0xff]
          %v783 = vld [vmem:[%s199 + $0xe8] sm:$0xff]
          %v784 = vld [vmem:[%s199 + $0xf0] sm:$0xff]
          %v785 = vld [vmem:[%s199 + $0xf8] sm:$0xff]
          %v786 = vadd.f32 %v754, 1.0
          %v787 = vadd.f32 %v755, 1.0
          %v788 = vadd.f32 %v756, 1.0
          %v789 = vadd.f32 %v757, 1.0
          %v790 = vadd.f32 %v758, 1.0
          %v791 = vadd.f32 %v759, 1.0
          %v792 = vadd.f32 %v760, 1.0
          %v793 = vadd.f32 %v761, 1.0
          %v794 = vadd.f32 %v762, 1.0
          %v795 = vadd.f32 %v763, 1.0
          %v796 = vadd.f32 %v764, 1.0
          %v797 = vadd.f32 %v765, 1.0
          %v798 = vadd.f32 %v766, 1.0
          %v799 = vadd.f32 %v767, 1.0
          %v800 = vadd.f32 %v768, 1.0
          %v801 = vadd.f32 %v769, 1.0
          %v802 = vadd.f32 %v770, 1.0
          %v803 = vadd.f32 %v771, 1.0
          %v804 = vadd.f32 %v772, 1.0
          %v805 = vadd.f32 %v773, 1.0
          %v806 = vadd.f32 %v774, 1.0
          %v807 = vadd.f32 %v775, 1.0
          %v808 = vadd.f32 %v776, 1.0
          %v809 = vadd.f32 %v777, 1.0
          %v810 = vadd.f32 %v778, 1.0
          %v811 = vadd.f32 %v779, 1.0
          %v812 = vadd.f32 %v780, 1.0
          %v813 = vadd.f32 %v781, 1.0
          %v814 = vadd.f32 %v782, 1.0
          %v815 = vadd.f32 %v783, 1.0
          %v816 = vadd.f32 %v784, 1.0
          %v817 = vadd.f32 %v785, 1.0
          %v818 = vrsqrt.pop %v786
          %v819 = vmul.f32 %v818, %v786
          %v820 = vmul.f32 %v819, %v818
          %v821 = vmul.f32 0.5, %v820
          %v822 = vsub.f32 1.5, %v821
          %v823 = vmul.f32 %v818, %v822
          %vm824 = vweird.f32 %v786
          %vm825 = vweird.f32 %v818
          %vm826 = vmor %vm824, %vm825
          %v827 = vsel %vm826, %v818, %v823
          %v828 = vrsqrt.pop %v787
          %v829 = vmul.f32 %v828, %v787
          %v830 = vmul.f32 %v829, %v828
          %v831 = vmul.f32 0.5, %v830
          %v832 = vsub.f32 1.5, %v831
          %v833 = vmul.f32 %v828, %v832
          %vm834 = vweird.f32 %v787
          %vm835 = vweird.f32 %v828
          %vm836 = vmor %vm834, %vm835
          %v837 = vsel %vm836, %v828, %v833
          %v838 = vrsqrt.pop %v788
          %v839 = vmul.f32 %v838, %v788
          %v840 = vmul.f32 %v839, %v838
          %v841 = vmul.f32 0.5, %v840
          %v842 = vsub.f32 1.5, %v841
          %v843 = vmul.f32 %v838, %v842
          %vm844 = vweird.f32 %v788
          %vm845 = vweird.f32 %v838
          %vm846 = vmor %vm844, %vm845
          %v847 = vsel %vm846, %v838, %v843
          %v848 = vrsqrt.pop %v789
          %v849 = vmul.f32 %v848, %v789
          %v850 = vmul.f32 %v849, %v848
          %v851 = vmul.f32 0.5, %v850
          %v852 = vsub.f32 1.5, %v851
          %v853 = vmul.f32 %v848, %v852
          %vm854 = vweird.f32 %v789
          %vm855 = vweird.f32 %v848
          %vm856 = vmor %vm854, %vm855
          %v857 = vsel %vm856, %v848, %v853
          %v858 = vrsqrt.pop %v790
          %v859 = vmul.f32 %v858, %v790
          %v860 = vmul.f32 %v859, %v858
          %v861 = vmul.f32 0.5, %v860
          %v862 = vsub.f32 1.5, %v861
          %v863 = vmul.f32 %v858, %v862
          %vm864 = vweird.f32 %v790
          %vm865 = vweird.f32 %v858
          %vm866 = vmor %vm864, %vm865
          %v867 = vsel %vm866, %v858, %v863
          %v868 = vrsqrt.pop %v791
          %v869 = vmul.f32 %v868, %v791
          %v870 = vmul.f32 %v869, %v868
          %v871 = vmul.f32 0.5, %v870
          %v872 = vsub.f32 1.5, %v871
          %v873 = vmul.f32 %v868, %v872
          %vm874 = vweird.f32 %v791
          %vm875 = vweird.f32 %v868
          %vm876 = vmor %vm874, %vm875
          %v877 = vsel %vm876, %v868, %v873
          %v878 = vrsqrt.pop %v792
          %v879 = vmul.f32 %v878, %v792
          %v880 = vmul.f32 %v879, %v878
          %v881 = vmul.f32 0.5, %v880
          %v882 = vsub.f32 1.5, %v881
          %v883 = vmul.f32 %v878, %v882
          %vm884 = vweird.f32 %v792
          %vm885 = vweird.f32 %v878
          %vm886 = vmor %vm884, %vm885
          %v887 = vsel %vm886, %v878, %v883
          %v888 = vrsqrt.pop %v793
          %v889 = vmul.f32 %v888, %v793
          %v890 = vmul.f32 %v889, %v888
          %v891 = vmul.f32 0.5, %v890
          %v892 = vsub.f32 1.5, %v891
          %v893 = vmul.f32 %v888, %v892
          %vm894 = vweird.f32 %v793
          %vm895 = vweird.f32 %v888
          %vm896 = vmor %vm894, %vm895
          %v897 = vsel %vm896, %v888, %v893
          %v898 = vrsqrt.pop %v794
          %v899 = vmul.f32 %v898, %v794
          %v900 = vmul.f32 %v899, %v898
          %v901 = vmul.f32 0.5, %v900
          %v902 = vsub.f32 1.5, %v901
          %v903 = vmul.f32 %v898, %v902
          %vm904 = vweird.f32 %v794
          %vm905 = vweird.f32 %v898
          %vm906 = vmor %vm904, %vm905
          %v907 = vsel %vm906, %v898, %v903
          %v908 = vrsqrt.pop %v795
          %v909 = vmul.f32 %v908, %v795
          %v910 = vmul.f32 %v909, %v908
          %v911 = vmul.f32 0.5, %v910
          %v912 = vsub.f32 1.5, %v911
          %v913 = vmul.f32 %v908, %v912
          %vm914 = vweird.f32 %v795
          %vm915 = vweird.f32 %v908
          %vm916 = vmor %vm914, %vm915
          %v917 = vsel %vm916, %v908, %v913
          %v918 = vrsqrt.pop %v796
          %v919 = vmul.f32 %v918, %v796
          %v920 = vmul.f32 %v919, %v918
          %v921 = vmul.f32 0.5, %v920
          %v922 = vsub.f32 1.5, %v921
          %v923 = vmul.f32 %v918, %v922
          %vm924 = vweird.f32 %v796
          %vm925 = vweird.f32 %v918
          %vm926 = vmor %vm924, %vm925
          %v927 = vsel %vm926, %v918, %v923
          %v928 = vrsqrt.pop %v797
          %v929 = vmul.f32 %v928, %v797
          %v930 = vmul.f32 %v929, %v928
          %v931 = vmul.f32 0.5, %v930
          %v932 = vsub.f32 1.5, %v931
          %v933 = vmul.f32 %v928, %v932
          %vm934 = vweird.f32 %v797
          %vm935 = vweird.f32 %v928
          %vm936 = vmor %vm934, %vm935
          %v937 = vsel %vm936, %v928, %v933
          %v938 = vrsqrt.pop %v798
          %v939 = vmul.f32 %v938, %v798
          %v940 = vmul.f32 %v939, %v938
          %v941 = vmul.f32 0.5, %v940
          %v942 = vsub.f32 1.5, %v941
          %v943 = vmul.f32 %v938, %v942
          %vm944 = vweird.f32 %v798
          %vm945 = vweird.f32 %v938
          %vm946 = vmor %vm944, %vm945
          %v947 = vsel %vm946, %v938, %v943
          %v948 = vrsqrt.pop %v799
          %v949 = vmul.f32 %v948, %v799
          %v950 = vmul.f32 %v949, %v948
          %v951 = vmul.f32 0.5, %v950
          %v952 = vsub.f32 1.5, %v951
          %v953 = vmul.f32 %v948, %v952
          %vm954 = vweird.f32 %v799
          %vm955 = vweird.f32 %v948
          %vm956 = vmor %vm954, %vm955
          %v957 = vsel %vm956, %v948, %v953
          %v958 = vrsqrt.pop %v800
          %v959 = vmul.f32 %v958, %v800
          %v960 = vmul.f32 %v959, %v958
          %v961 = vmul.f32 0.5, %v960
          %v962 = vsub.f32 1.5, %v961
          %v963 = vmul.f32 %v958, %v962
          %vm964 = vweird.f32 %v800
          %vm965 = vweird.f32 %v958
          %vm966 = vmor %vm964, %vm965
          %v967 = vsel %vm966, %v958, %v963
          %v968 = vrsqrt.pop %v801
          %v969 = vmul.f32 %v968, %v801
          %v970 = vmul.f32 %v969, %v968
          %v971 = vmul.f32 0.5, %v970
          %v972 = vsub.f32 1.5, %v971
          %v973 = vmul.f32 %v968, %v972
          %vm974 = vweird.f32 %v801
          %vm975 = vweird.f32 %v968
          %vm976 = vmor %vm974, %vm975
          %v977 = vsel %vm976, %v968, %v973
          %v978 = vrsqrt.pop %v802
          %v979 = vmul.f32 %v978, %v802
          %v980 = vmul.f32 %v979, %v978
          %v981 = vmul.f32 0.5, %v980
          %v982 = vsub.f32 1.5, %v981
          %v983 = vmul.f32 %v978, %v982
          %vm984 = vweird.f32 %v802
          %vm985 = vweird.f32 %v978
          %vm986 = vmor %vm984, %vm985
          %v987 = vsel %vm986, %v978, %v983
          %v988 = vrsqrt.pop %v803
          %v989 = vmul.f32 %v988, %v803
          %v990 = vmul.f32 %v989, %v988
          %v991 = vmul.f32 0.5, %v990
          %v992 = vsub.f32 1.5, %v991
          %v993 = vmul.f32 %v988, %v992
          %vm994 = vweird.f32 %v803
          %vm995 = vweird.f32 %v988
          %vm996 = vmor %vm994, %vm995
          %v997 = vsel %vm996, %v988, %v993
          %v998 = vrsqrt.pop %v804
          %v999 = vmul.f32 %v998, %v804
          %v1000 = vmul.f32 %v999, %v998
          %v1001 = vmul.f32 0.5, %v1000
          %v1002 = vsub.f32 1.5, %v1001
          %v1003 = vmul.f32 %v998, %v1002
          %vm1004 = vweird.f32 %v804
          %vm1005 = vweird.f32 %v998
          %vm1006 = vmor %vm1004, %vm1005
          %v1007 = vsel %vm1006, %v998, %v1003
          %v1008 = vrsqrt.pop %v805
          %v1009 = vmul.f32 %v1008, %v805
          %v1010 = vmul.f32 %v1009, %v1008
          %v1011 = vmul.f32 0.5, %v1010
          %v1012 = vsub.f32 1.5, %v1011
          %v1013 = vmul.f32 %v1008, %v1012
          %vm1014 = vweird.f32 %v805
          %vm1015 = vweird.f32 %v1008
          %vm1016 = vmor %vm1014, %vm1015
          %v1017 = vsel %vm1016, %v1008, %v1013
          %v1018 = vrsqrt.pop %v806
          %v1019 = vmul.f32 %v1018, %v806
          %v1020 = vmul.f32 %v1019, %v1018
          %v1021 = vmul.f32 0.5, %v1020
          %v1022 = vsub.f32 1.5, %v1021
          %v1023 = vmul.f32 %v1018, %v1022
          %vm1024 = vweird.f32 %v806
          %vm1025 = vweird.f32 %v1018
          %vm1026 = vmor %vm1024, %vm1025
          %v1027 = vsel %vm1026, %v1018, %v1023
          %v1028 = vrsqrt.pop %v807
          %v1029 = vmul.f32 %v1028, %v807
          %v1030 = vmul.f32 %v1029, %v1028
          %v1031 = vmul.f32 0.5, %v1030
          %v1032 = vsub.f32 1.5, %v1031
          %v1033 = vmul.f32 %v1028, %v1032
          %vm1034 = vweird.f32 %v807
          %vm1035 = vweird.f32 %v1028
          %vm1036 = vmor %vm1034, %vm1035
          %v1037 = vsel %vm1036, %v1028, %v1033
          %v1038 = vrsqrt.pop %v808
          %v1039 = vmul.f32 %v1038, %v808
          %v1040 = vmul.f32 %v1039, %v1038
          %v1041 = vmul.f32 0.5, %v1040
          %v1042 = vsub.f32 1.5, %v1041
          %v1043 = vmul.f32 %v1038, %v1042
          %vm1044 = vweird.f32 %v808
          %vm1045 = vweird.f32 %v1038
          %vm1046 = vmor %vm1044, %vm1045
          %v1047 = vsel %vm1046, %v1038, %v1043
          %v1048 = vrsqrt.pop %v809
          %v1049 = vmul.f32 %v1048, %v809
          %v1050 = vmul.f32 %v1049, %v1048
          %v1051 = vmul.f32 0.5, %v1050
          %v1052 = vsub.f32 1.5, %v1051
          %v1053 = vmul.f32 %v1048, %v1052
          %vm1054 = vweird.f32 %v809
          %vm1055 = vweird.f32 %v1048
          %vm1056 = vmor %vm1054, %vm1055
          %v1057 = vsel %vm1056, %v1048, %v1053
          %v1058 = vrsqrt.pop %v810
          %v1059 = vmul.f32 %v1058, %v810
          %v1060 = vmul.f32 %v1059, %v1058
          %v1061 = vmul.f32 0.5, %v1060
          %v1062 = vsub.f32 1.5, %v1061
          %v1063 = vmul.f32 %v1058, %v1062
          %vm1064 = vweird.f32 %v810
          %vm1065 = vweird.f32 %v1058
          %vm1066 = vmor %vm1064, %vm1065
          %v1067 = vsel %vm1066, %v1058, %v1063
          %v1068 = vrsqrt.pop %v811
          %v1069 = vmul.f32 %v1068, %v811
          %v1070 = vmul.f32 %v1069, %v1068
          %v1071 = vmul.f32 0.5, %v1070
          %v1072 = vsub.f32 1.5, %v1071
          %v1073 = vmul.f32 %v1068, %v1072
          %vm1074 = vweird.f32 %v811
          %vm1075 = vweird.f32 %v1068
          %vm1076 = vmor %vm1074, %vm1075
          %v1077 = vsel %vm1076, %v1068, %v1073
          %v1078 = vrsqrt.pop %v812
          %v1079 = vmul.f32 %v1078, %v812
          %v1080 = vmul.f32 %v1079, %v1078
          %v1081 = vmul.f32 0.5, %v1080
          %v1082 = vsub.f32 1.5, %v1081
          %v1083 = vmul.f32 %v1078, %v1082
          %vm1084 = vweird.f32 %v812
          %vm1085 = vweird.f32 %v1078
          %vm1086 = vmor %vm1084, %vm1085
          %v1087 = vsel %vm1086, %v1078, %v1083
          %v1088 = vrsqrt.pop %v813
          %v1089 = vmul.f32 %v1088, %v813
          %v1090 = vmul.f32 %v1089, %v1088
          %v1091 = vmul.f32 0.5, %v1090
          %v1092 = vsub.f32 1.5, %v1091
          %v1093 = vmul.f32 %v1088, %v1092
          %vm1094 = vweird.f32 %v813
          %vm1095 = vweird.f32 %v1088
          %vm1096 = vmor %vm1094, %vm1095
          %v1097 = vsel %vm1096, %v1088, %v1093
          %v1098 = vrsqrt.pop %v814
          %v1099 = vmul.f32 %v1098, %v814
          %v1100 = vmul.f32 %v1099, %v1098
          %v1101 = vmul.f32 0.5, %v1100
          %v1102 = vsub.f32 1.5, %v1101
          %v1103 = vmul.f32 %v1098, %v1102
          %vm1104 = vweird.f32 %v814
          %vm1105 = vweird.f32 %v1098
          %vm1106 = vmor %vm1104, %vm1105
          %v1107 = vsel %vm1106, %v1098, %v1103
          %v1108 = vrsqrt.pop %v815
          %v1109 = vmul.f32 %v1108, %v815
          %v1110 = vmul.f32 %v1109, %v1108
          %v1111 = vmul.f32 0.5, %v1110
          %v1112 = vsub.f32 1.5, %v1111
          %v1113 = vmul.f32 %v1108, %v1112
          %vm1114 = vweird.f32 %v815
          %vm1115 = vweird.f32 %v1108
          %vm1116 = vmor %vm1114, %vm1115
          %v1117 = vsel %vm1116, %v1108, %v1113
          %v1118 = vrsqrt.pop %v816
          %v1119 = vmul.f32 %v1118, %v816
          %v1120 = vmul.f32 %v1119, %v1118
          %v1121 = vmul.f32 0.5, %v1120
          %v1122 = vsub.f32 1.5, %v1121
          %v1123 = vmul.f32 %v1118, %v1122
          %vm1124 = vweird.f32 %v816
          %vm1125 = vweird.f32 %v1118
          %vm1126 = vmor %vm1124, %vm1125
          %v1127 = vsel %vm1126, %v1118, %v1123
          %v1128 = vrsqrt.pop %v817
          %v1129 = vmul.f32 %v1128, %v817
          %v1130 = vmul.f32 %v1129, %v1128
          %v1131 = vmul.f32 0.5, %v1130
          %v1132 = vsub.f32 1.5, %v1131
          %v1133 = vmul.f32 %v1128, %v1132
          %vm1134 = vweird.f32 %v817
          %vm1135 = vweird.f32 %v1128
          %vm1136 = vmor %vm1134, %vm1135
          %v1137 = vsel %vm1136, %v1128, %v1133
          %1138 = vst.msk [vmem:[%s199] sm:$0xff] %vm718, %v827
          %1139 = vst.msk [vmem:[%s199 + $0x8] sm:$0xff] %vm718, %v837
          %1140 = vst.msk [vmem:[%s199 + $0x10] sm:$0xff] %vm718, %v847
          %1141 = vst.msk [vmem:[%s199 + $0x18] sm:$0xff] %vm718, %v857
          %1142 = vst.msk [vmem:[%s199 + $0x20] sm:$0xff] %vm718, %v867
          %1143 = vst.msk [vmem:[%s199 + $0x28] sm:$0xff] %vm718, %v877
          %1144 = vst.msk [vmem:[%s199 + $0x30] sm:$0xff] %vm718, %v887
          %1145 = vst.msk [vmem:[%s199 + $0x38] sm:$0xff] %vm718, %v897
          %1146 = vst.msk [vmem:[%s199 + $0x40] sm:$0xff] %vm718, %v907
          %1147 = vst.msk [vmem:[%s199 + $0x48] sm:$0xff] %vm718, %v917
          %1148 = vst.msk [vmem:[%s199 + $0x50] sm:$0xff] %vm718, %v927
          %1149 = vst.msk [vmem:[%s199 + $0x58] sm:$0xff] %vm718, %v937
          %1150 = vst.msk [vmem:[%s199 + $0x60] sm:$0xff] %vm718, %v947
          %1151 = vst.msk [vmem:[%s199 + $0x68] sm:$0xff] %vm718, %v957
          %1152 = vst.msk [vmem:[%s199 + $0x70] sm:$0xff] %vm718, %v967
          %1153 = vst.msk [vmem:[%s199 + $0x78] sm:$0xff] %vm718, %v977
          %1154 = vst.msk [vmem:[%s199 + $0x80] sm:$0xff] %vm718, %v987
          %1155 = vst.msk [vmem:[%s199 + $0x88] sm:$0xff] %vm718, %v997
          %1156 = vst.msk [vmem:[%s199 + $0x90] sm:$0xff] %vm718, %v1007
          %1157 = vst.msk [vmem:[%s199 + $0x98] sm:$0xff] %vm718, %v1017
          %1158 = vst.msk [vmem:[%s199 + $0xa0] sm:$0xff] %vm718, %v1027
          %1159 = vst.msk [vmem:[%s199 + $0xa8] sm:$0xff] %vm718, %v1037
          %1160 = vst.msk [vmem:[%s199 + $0xb0] sm:$0xff] %vm718, %v1047
          %1161 = vst.msk [vmem:[%s199 + $0xb8] sm:$0xff] %vm718, %v1057
          %1162 = vst.msk [vmem:[%s199 + $0xc0] sm:$0xff] %vm718, %v1067
          %1163 = vst.msk [vmem:[%s199 + $0xc8] sm:$0xff] %vm718, %v1077
          %1164 = vst.msk [vmem:[%s199 + $0xd0] sm:$0xff] %vm718, %v1087
          %1165 = vst.msk [vmem:[%s199 + $0xd8] sm:$0xff] %vm718, %v1097
          %1166 = vst.msk [vmem:[%s199 + $0xe0] sm:$0xff] %vm718, %v1107
          %1167 = vst.msk [vmem:[%s199 + $0xe8] sm:$0xff] %vm718, %v1117
          %1168 = vst.msk [vmem:[%s199 + $0xf0] sm:$0xff] %vm718, %v1127
          %1169 = vst.msk [vmem:[%s199 + $0xf8] sm:$0xff] %vm718, %v1137
        $region36: #{tpu_custom_call.1} parent=23 // pred_fallthru
          _
        %s1170 = sand.u32 %s70, 1
        %s1171 = scalar_lea.sflag [#allocation4], %s1170
        %s1172 = sand.u32 %s70, 1
        %s1173 = smul.addr %s1172, 512
        %s1174 = scalar_lea.vmem [#allocation5], %s1173
        %s1175 = smul.u32 32, %s24
        %p1176 = scmp.lt.s32.totalorder %s1175, 63
        %s1177 = scalar_select %p1176, %s1175, 63
        %s1178 = smul.addr %s1177, 8
        %s1179 = scalar_lea.vmem %s2, %s1178
        // Predicated region
        $region37: #{tpu_custom_call.1} parent=23 // pred_check
          %p1180 = pneg %p80
        $region38: #{tpu_custom_call.1} parent=23 // pred_check_branch
          %1182 = sbr.rel (%p1180) target = $region40
        $region39: #{tpu_custom_call.1} parent=23 // pred_region
          %s1183 = smul.u32 32, %s24
          %s1184 = smul.u32 4, %s25
          %1186 = vsyncadd %s1171, 0
          %s1187 = smul.addr %s1183, 4
          %s1188 = sadd.s32 %s1184, %s1187
          %s1189 = smul.addr %s1188, 4
          %s1190 = scalar_lea.hbm %s1, %s1189
          %s1191 = sshll.u32 %s1174, 4
          %s1192 = int_to_ptr.vmem [resolvable:$true] %s1191
          %s1193 = sshll.u32 %s1190, 4
          %s1194 = int_to_ptr.hbm [resolvable:$true] %s1193
          %1199 = dma.vmem_to_hbm [thread:$0]  %s1192, 8192, %s1194, %s1171, 256, 256, 16
        $region40: #{tpu_custom_call.1} parent=23 // pred_fallthru
          _
        // Predicated region
        $region41: #{tpu_custom_call.1} parent=23 // pred_check
          %p1200 = pneg %p106
        $region42: #{tpu_custom_call.1} parent=23 // pred_check_branch
          %1202 = sbr.rel (%p1200) target = $region44
        $region43: #{tpu_custom_call.1} parent=23 // pred_region
          %s1203 = smul.u32 32, %s24
        $region44: #{tpu_custom_call.1} parent=23 // pred_fallthru
          _
      $region24: #{tpu_custom_call.1} parent=5 // pred_fallthru
        _
      %p1204 = scmp.le.s32.totalorder 2, %s15
      // Predicated region
      $region45: #{tpu_custom_call.1} parent=5 // pred_check
        %p1205 = pneg %p1204
      $region46: #{tpu_custom_call.1} parent=5 // pred_check_branch
        %1207 = sbr.rel (%p1205) target = $region48
      $region47: #{tpu_custom_call.1} parent=5 // pred_region
        %s1208 = ssub.s32 %s15, 2
        // Predicated region
        $region49: #{tpu_custom_call.1} parent=47 // pred_check
          %p1209 = pneg %p86
        $region50: #{tpu_custom_call.1} parent=47 // pred_check_branch
          %1211 = sbr.rel (%p1209) target = $region52
        $region51: #{tpu_custom_call.1} parent=47 // pred_region
          %s1212 = sand.u32 %s71, 1
          %s1213 = scalar_lea.sflag [#allocation4], %s1212
          %s1214 = sand.u32 %s71, 1
          %s1215 = smul.addr %s1214, 512
          %s1216 = scalar_lea.vmem [#allocation5], %s1215
          %1218 = dma.done %s1213, 8192
        $region52: #{tpu_custom_call.1} parent=47 // pred_fallthru
          _
        // Predicated region
        $region53: #{tpu_custom_call.1} parent=47 // pred_check
          %p1219 = pneg %p112
        $region54: #{tpu_custom_call.1} parent=47 // pred_check_branch
          %1221 = sbr.rel (%p1219) target = $region56
        $region55: #{tpu_custom_call.1} parent=47 // pred_region
          %s1222 = smul.u32 32, %s26
          %p1223 = scmp.lt.s32.totalorder %s1222, 63
          %s1224 = scalar_select %p1223, %s1222, 63
          %s1225 = smul.addr %s1224, 8
          %s1226 = scalar_lea.vmem %s2, %s1225
        $region56: #{tpu_custom_call.1} parent=47 // pred_fallthru
          _
      $region48: #{tpu_custom_call.1} parent=5 // pred_fallthru
        _
    $region6: #{tpu_custom_call.1} parent=1 // loop_footer
      %s19 = sadd.s32 1, %s15
    $region7: #{tpu_custom_call.1} parent=1 // loop_footer_branch
      %14 = sbr.rel target = $region3
    $region8: #{tpu_custom_call.1} parent=1 // loop_exit
      _
    %1227 = vsyncpa [#allocation3], 1
    %s1228 = scalar_lea.sflag [#allocation3], 1
    %1229 = vsyncpa %s1228, 1
    %1230 = vsyncpa [#allocation4], 1
    %s1231 = scalar_lea.sflag [#allocation4], 1
    %1232 = vsyncpa %s1231, 1

</llo_original>
